<compile_context>
chip_gen: v5e
topology: v5e:2x2
jax: 0.10.0
libtpu: 0.0.40
codegen_flags: <defaults>
</compile_context>

<pallas_src>
import functools

import jax
import jax.numpy as jnp
from jax.experimental import pallas as pl
from jax.experimental.pallas import tpu as pltpu

_LANES = 128


def _dice_loss_kernel(p_ref, t_ref, dice_ref, inter_ref, union_ref,
                      *, smooth: float, valid_rows: int, tile_rows: int,
                      mask_rows: bool):
    ri = pl.program_id(1)
    last = pl.num_programs(1) - 1

    @pl.when(ri == 0)
    def _():
        inter_ref[...] = jnp.zeros_like(inter_ref)
        union_ref[...] = jnp.zeros_like(union_ref)

    p = p_ref[...].astype(jnp.float32)   # (1, tile_rows, 128)
    t = t_ref[...].astype(jnp.float32)

    if mask_rows:
        # Only the final row tile can be ragged.  Gate the mask to it so every
        # other tile is a plain mul/add stream (keeps v7x HBM-bound).
        @pl.when(ri != last)
        def _():
            inter_ref[...] += (p * t).sum(axis=1)
            union_ref[...] += (p + t).sum(axis=1)

        @pl.when(ri == last)
        def _():
            # OOB rows of the ragged block are unspecified (possibly NaN/Inf);
            # zero them BEFORE the multiply/add so nothing propagates.
            row = ri * tile_rows + jax.lax.broadcasted_iota(
                jnp.int32, p.shape, dimension=1)
            valid = row < valid_rows
            pm = jnp.where(valid, p, 0.0)
            tm = jnp.where(valid, t, 0.0)
            inter_ref[...] += (pm * tm).sum(axis=1)
            union_ref[...] += (pm + tm).sum(axis=1)
    else:
        # Sublane-only reduction per step; the 128 lanes stay the accumulator.
        inter_ref[...] += (p * t).sum(axis=1)
        union_ref[...] += (p + t).sum(axis=1)

    @pl.when(ri == last)
    def _():
        inter = inter_ref[...].sum(axis=1, keepdims=True)   # (1, 1)
        union = union_ref[...].sum(axis=1, keepdims=True)   # (1, 1)
        dice = (2.0 * inter + smooth) / (union + smooth)
        dice_ref[...] = jnp.broadcast_to(dice, dice_ref.shape).astype(
            dice_ref.dtype)


def _vmem_budget():
    """Generation-aware (block_bytes per input block, scoped VMEM limit)."""
    mib = 1024 * 1024
    phys = None
    try:
        info = pltpu.get_tpu_info()
        phys = getattr(info, "vmem_capacity_bytes", None)
    except Exception:
        phys = None
    if phys is not None and phys > 64 * mib:
        # v5e / v6e: 128 MiB physical VMEM -> big blocks, 64 MiB scoped limit.
        # 2 inputs x 2 pipeline buffers x 10 MiB = 40 MiB << 64 MiB.
        return 10 * mib, 64 * mib
    # v7x (64 MiB per TC) or unknown chip: 2 x 2 x 6 MiB = 24 MiB <= 44 MiB.
    return 6 * mib, 44 * mib


def dice_loss(predictions: jax.Array, targets: jax.Array,
              smooth: float = 1.0,
              block_bytes: int | None = None,
              vmem_limit_bytes: int | None = None) -> jax.Array:
    """Pallas implementation of DiceLoss.forward (returns a scalar)."""
    assert predictions.shape == targets.shape
    b = predictions.shape[0]
    p = predictions.reshape(b, -1)
    t = targets.reshape(b, -1)
    n = p.shape[1]

    if block_bytes is None or vmem_limit_bytes is None:
        auto_block, auto_vmem = _vmem_budget()
        block_bytes = block_bytes or auto_block
        vmem_limit_bytes = vmem_limit_bytes or auto_vmem

    # Reshape (b, N) -> (b, R, 128).  Metadata-only when N % 128 == 0.
    pad = (-n) % _LANES
    if pad:
        # TODO(synk): for ragged N this jnp.pad copies both inputs in HBM;
        # an in-kernel lane-tail mask on the raw (b, N) layout would avoid it.
        p = jnp.pad(p, ((0, 0), (0, pad)))
        t = jnp.pad(t, ((0, 0), (0, pad)))
    r = (n + pad) // _LANES
    p = p.reshape(b, r, _LANES)
    t = t.reshape(b, r, _LANES)

    p_item = jnp.dtype(p.dtype).itemsize
    t_item = jnp.dtype(t.dtype).itemsize
    # Row tile: multiple of 8 sublanes, sized toward `block_bytes` per input
    # block.  If the whole sample fits, use the exact extent (no masking).
    budget_rows = max(8, (block_bytes // (_LANES * max(p_item, t_item))) // 8 * 8)
    if r <= budget_rows:
        tile_rows = r
    else:
        tile_rows = budget_rows
    num_row_tiles = pl.cdiv(r, tile_rows)
    mask_rows = (num_row_tiles * tile_rows) != r

    kernel = functools.partial(
        _dice_loss_kernel, smooth=float(smooth), valid_rows=r,
        tile_rows=tile_rows, mask_rows=mask_rows)

    flat_n = r * _LANES
    cost = pl.CostEstimate(
        flops=3 * b * flat_n,
        transcendentals=0,
        bytes_accessed=b * flat_n * (p_item + t_item) + b * 8 * _LANES * 4)

    # TODO(synk): when B == 1 on v7x the second TensorCore idles; a 2-way row
    # split with per-core partial accumulators would recover ~2x there.
    dice_slab = pl.pallas_call(
        kernel,
        out_shape=jax.ShapeDtypeStruct((b, 8, _LANES), jnp.float32),
        grid_spec=pltpu.PrefetchScalarGridSpec(
            num_scalar_prefetch=0,
            grid=(b, num_row_tiles),
            in_specs=[
                pl.BlockSpec((1, tile_rows, _LANES),
                             lambda bi, ri: (bi, ri, 0)),
                pl.BlockSpec((1, tile_rows, _LANES),
                             lambda bi, ri: (bi, ri, 0)),
            ],
            out_specs=pl.BlockSpec((1, 8, _LANES), lambda bi, ri: (bi, 0, 0)),
            scratch_shapes=[
                pltpu.VMEM((1, _LANES), jnp.float32),  # sum(p * t) per lane
                pltpu.VMEM((1, _LANES), jnp.float32),  # sum(p + t) per lane
            ],
        ),
        compiler_params=pltpu.CompilerParams(
            dimension_semantics=("parallel", "arbitrary"),
            vmem_limit_bytes=vmem_limit_bytes),
        cost_estimate=cost,
    )(p, t)

    dice = dice_slab[:, 0, 0]            # per-sample dice
    return 1.0 - jnp.mean(dice)          # tiny final mean in XLA


def _dice_loss_ref(predictions, targets, smooth=1.0):
    b = predictions.shape[0]
    p = predictions.reshape(b, -1).astype(jnp.float32)
    t = targets.reshape(b, -1).astype(jnp.float32)
    intersection = (p * t).sum(axis=1)
    union = p.sum(axis=1) + t.sum(axis=1)
    dice = (2.0 * intersection + smooth) / (union + smooth)
    return 1.0 - dice.mean()


if __name__ == "__main__":
    key = jax.random.PRNGKey(0)
    kp, kt = jax.random.split(key)

    # NCHW, matching the PyTorch module's expected segmentation inputs.
    B, C, H, W = 2, 4, 16, 16
    predictions = jax.nn.sigmoid(
        jax.random.normal(kp, (B, C, H, W), dtype=jnp.float32))
    targets = (jax.random.uniform(kt, (B, C, H, W)) > 0.5).astype(jnp.float32)

    loss = jax.block_until_ready(dice_loss(predictions, targets, smooth=1.0))
    ref = _dice_loss_ref(predictions, targets, smooth=1.0)
    assert jnp.allclose(loss, ref, rtol=1e-5, atol=1e-5), (loss, ref)

    print("KERNEL_OK")
</pallas_src>

<mosaic_0001>
module attributes {stable_mosaic.version = 11 : i64} {
  func.func @_dice_loss_kernel(%arg0: i32, %arg1: i32, %arg2: memref<1x8x128xf32, #tpu.memory_space<vmem>>, %arg3: memref<1x8x128xf32, #tpu.memory_space<vmem>>, %arg4: memref<1x8x128xf32, #tpu.memory_space<vmem>>, %arg5: memref<1x128xf32, #tpu.memory_space<vmem>>, %arg6: memref<1x128xf32, #tpu.memory_space<vmem>>) attributes {dimension_semantics = [#tpu.dimension_semantics<parallel>, #tpu.dimension_semantics<arbitrary>], iteration_bounds = array<i64: 2, 1>, scalar_prefetch = 0 : i64, scratch_operands = 2 : i64, tpu.core_type = #tpu.core_type<tc>, window_params = [{transform_indices = @transform_0, window_bounds = array<i64: 1, 8, 128>}, {transform_indices = @transform_1, window_bounds = array<i64: 1, 8, 128>}, {transform_indices = @transform_2, window_bounds = array<i64: 1, 8, 128>}]} {
    %c0_i32 = arith.constant 0 : i32
    %0 = arith.cmpi eq, %arg1, %c0_i32 : i32
    %1 = arith.extui %0 : i1 to i32
    %c0_i32_0 = arith.constant 0 : i32
    %2 = arith.cmpi ne, %1, %c0_i32_0 : i32
    scf.if %2 {
      %cst_17 = arith.constant 0.000000e+00 : f32
      %18 = vector.broadcast %cst_17 : f32 to vector<1x128xf32>
      %c0_18 = arith.constant 0 : index
      %c0_19 = arith.constant 0 : index
      %19 = vector.load %arg5[%c0_18, %c0_19] : memref<1x128xf32, #tpu.memory_space<vmem>>, vector<1x128xf32>
      tpu.vector_store %arg5[%c0_18, %c0_19], %18 {strides = array<i32>} : memref<1x128xf32, #tpu.memory_space<vmem>>, vector<1x128xf32>,
      %cst_20 = arith.constant 0.000000e+00 : f32
      %20 = vector.broadcast %cst_20 : f32 to vector<1x128xf32>
      %c0_21 = arith.constant 0 : index
      %c0_22 = arith.constant 0 : index
      %21 = vector.load %arg6[%c0_21, %c0_22] : memref<1x128xf32, #tpu.memory_space<vmem>>, vector<1x128xf32>
      tpu.vector_store %arg6[%c0_21, %c0_22], %20 {strides = array<i32>} : memref<1x128xf32, #tpu.memory_space<vmem>>, vector<1x128xf32>,
    } else {
    }
    %c0 = arith.constant 0 : index
    %c0_1 = arith.constant 0 : index
    %c0_2 = arith.constant 0 : index
    %3 = vector.load %arg2[%c0, %c0_1, %c0_2] : memref<1x8x128xf32, #tpu.memory_space<vmem>>, vector<1x8x128xf32>
    %c0_3 = arith.constant 0 : index
    %c0_4 = arith.constant 0 : index
    %c0_5 = arith.constant 0 : index
    %4 = vector.load %arg3[%c0_3, %c0_4, %c0_5] : memref<1x8x128xf32, #tpu.memory_space<vmem>>, vector<1x8x128xf32>
    %c0_6 = arith.constant 0 : index
    %c0_7 = arith.constant 0 : index
    %5 = vector.load %arg5[%c0_6, %c0_7] : memref<1x128xf32, #tpu.memory_space<vmem>>, vector<1x128xf32>
    %6 = arith.mulf %3, %4 : vector<1x8x128xf32>
    %cst = arith.constant dense<0.000000e+00> : vector<1x128xf32>
    %7 = vector.multi_reduction <add>, %6, %cst [1] : vector<1x8x128xf32> to vector<1x128xf32>
    %8 = arith.addf %5, %7 : vector<1x128xf32>
    %c0_8 = arith.constant 0 : index
    %c0_9 = arith.constant 0 : index
    %9 = vector.load %arg5[%c0_8, %c0_9] : memref<1x128xf32, #tpu.memory_space<vmem>>, vector<1x128xf32>
    tpu.vector_store %arg5[%c0_8, %c0_9], %8 {strides = array<i32>} : memref<1x128xf32, #tpu.memory_space<vmem>>, vector<1x128xf32>,
    %c0_10 = arith.constant 0 : index
    %c0_11 = arith.constant 0 : index
    %10 = vector.load %arg6[%c0_10, %c0_11] : memref<1x128xf32, #tpu.memory_space<vmem>>, vector<1x128xf32>
    %11 = arith.addf %3, %4 : vector<1x8x128xf32>
    %cst_12 = arith.constant dense<0.000000e+00> : vector<1x128xf32>
    %12 = vector.multi_reduction <add>, %11, %cst_12 [1] : vector<1x8x128xf32> to vector<1x128xf32>
    %13 = arith.addf %10, %12 : vector<1x128xf32>
    %c0_13 = arith.constant 0 : index
    %c0_14 = arith.constant 0 : index
    %14 = vector.load %arg6[%c0_13, %c0_14] : memref<1x128xf32, #tpu.memory_space<vmem>>, vector<1x128xf32>
    tpu.vector_store %arg6[%c0_13, %c0_14], %13 {strides = array<i32>} : memref<1x128xf32, #tpu.memory_space<vmem>>, vector<1x128xf32>,
    %c0_i32_15 = arith.constant 0 : i32
    %15 = arith.cmpi eq, %arg1, %c0_i32_15 : i32
    %16 = arith.extui %15 : i1 to i32
    %c0_i32_16 = arith.constant 0 : i32
    %17 = arith.cmpi ne, %16, %c0_i32_16 : i32
    scf.if %17 {
      %c0_17 = arith.constant 0 : index
      %c0_18 = arith.constant 0 : index
      %18 = vector.load %arg5[%c0_17, %c0_18] : memref<1x128xf32, #tpu.memory_space<vmem>>, vector<1x128xf32>
      %cst_19 = arith.constant dense<0.000000e+00> : vector<1xf32>
      %19 = vector.multi_reduction <add>, %18, %cst_19 [1] : vector<1x128xf32> to vector<1xf32>
      %20 = vector.shape_cast %19 : vector<1xf32> to vector<1x1xf32>
      %c0_20 = arith.constant 0 : index
      %c0_21 = arith.constant 0 : index
      %21 = vector.load %arg6[%c0_20, %c0_21] : memref<1x128xf32, #tpu.memory_space<vmem>>, vector<1x128xf32>
      %cst_22 = arith.constant dense<0.000000e+00> : vector<1xf32>
      %22 = vector.multi_reduction <add>, %21, %cst_22 [1] : vector<1x128xf32> to vector<1xf32>
      %23 = vector.shape_cast %22 : vector<1xf32> to vector<1x1xf32>
      %cst_23 = arith.constant 2.000000e+00 : f32
      %24 = vector.broadcast %cst_23 : f32 to vector<1x1xf32>
      %25 = arith.mulf %24, %20 : vector<1x1xf32>
      %cst_24 = arith.constant 1.000000e+00 : f32
      %26 = vector.broadcast %cst_24 : f32 to vector<1x1xf32>
      %27 = arith.addf %25, %26 : vector<1x1xf32>
      %cst_25 = arith.constant 1.000000e+00 : f32
      %28 = vector.broadcast %cst_25 : f32 to vector<1x1xf32>
      %29 = arith.addf %23, %28 : vector<1x1xf32>
      %30 = arith.divf %27, %29 : vector<1x1xf32>
      %31 = vector.shape_cast %30 : vector<1x1xf32> to vector<1x1x1xf32>
      %32 = vector.broadcast %31 : vector<1x1x1xf32> to vector<1x8x128xf32>
      %c0_26 = arith.constant 0 : index
      %c0_27 = arith.constant 0 : index
      %c0_28 = arith.constant 0 : index
      %33 = vector.load %arg4[%c0_26, %c0_27, %c0_28] : memref<1x8x128xf32, #tpu.memory_space<vmem>>, vector<1x8x128xf32>
      tpu.vector_store %arg4[%c0_26, %c0_27, %c0_28], %32 {strides = array<i32>} : memref<1x8x128xf32, #tpu.memory_space<vmem>>, vector<1x8x128xf32>,
    } else {
    }
    return
  }
  func.func @transform_0(%arg0: i32, %arg1: i32) -> (i32, i32, i32) {
    %c0_i32 = arith.constant 0 : i32
    %c0_i32_0 = arith.constant 0 : i32
    return %arg0, %arg1, %c0_i32 : i32, i32, i32
  }
  func.func @transform_1(%arg0: i32, %arg1: i32) -> (i32, i32, i32) {
    %c0_i32 = arith.constant 0 : i32
    %c0_i32_0 = arith.constant 0 : i32
    return %arg0, %arg1, %c0_i32 : i32, i32, i32
  }
  func.func @transform_2(%arg0: i32, %arg1: i32) -> (i32, i32, i32) {
    %c0_i32 = arith.constant 0 : i32
    %c0_i32_0 = arith.constant 0 : i32
    %c0_i32_1 = arith.constant 0 : i32
    return %arg0, %c0_i32, %c0_i32_0 : i32, i32, i32
  }
}

</mosaic_0001>

<llo_original>
// kernel: tpu_custom_call.1
$region0: #{tpu_custom_call.1}
  #allocation0 [shape = 'u32[]', space=smem, size = 0x4, offset = 0x4, fixed_abs, tag = 'smem constant byte address 0x4 - core index']
  #allocation1 [shape = 'u32[72,128]{1,0:T(1,128)}', space=vmem, size = 0x9000, scoped, tag = 'internal scratch']
  #allocation2 [shape = 'f32[1,128]{1,0:T(1,128)}', space=vmem, size = 0x200, scoped, tag = 'scratch operand']
  #allocation3 [shape = 'f32[1,128]{1,0:T(1,128)}', space=vmem, size = 0x200, scoped, tag = 'scratch operand']
  %s0 = inlined_call_operand.hbm [shape: f32[2,8,128], index: 0, kind: input, shape index: {}]
  %s1 = inlined_call_operand.hbm [shape: f32[2,8,128], index: 1, kind: input, shape index: {}]
  %s2 = inlined_call_operand.hbm [shape: f32[2,8,128], index: 2, kind: output, shape index: {}]
  %s3 = sld [smem:[#allocation0]]
  $region57: #{tpu_custom_call.1} parent=0
    _
  %s5 = ssub.s32 1, %s3
  %s6 = scalar_select 0, %s5, %s3
  $region1: #{tpu_custom_call.1} parent=0
    #allocation4 [shape = 'u8[8192]{0}', space=vmem, size = 0x2000, scoped, tag = 'input window, operand 0']
    #allocation5 [shape = 's32[2]{0}', space=sflag, size = 0x8, scoped, tag = 'scoped memory for tpu_custom_call.1']
    #allocation6 [shape = 's32[2]{0}', space=sflag, size = 0x8, scoped, tag = 'scoped memory for tpu_custom_call.1']
    #allocation7 [shape = 'u8[8192]{0}', space=vmem, size = 0x2000, scoped, tag = 'input window, operand 1']
    #allocation8 [shape = 's32[2]{0}', space=sflag, size = 0x8, scoped, tag = 'scoped memory for tpu_custom_call.1']
    #allocation9 [shape = 'u8[8192]{0}', space=vmem, size = 0x2000, scoped, tag = 'output window, operand 0']
    %7 = vsyncpa [#allocation5], 0
    %s8 = scalar_lea.sflag [#allocation5], 1
    %9 = vsyncpa %s8, 0
    %10 = vsyncpa [#allocation8], 0
    %s11 = scalar_lea.sflag [#allocation8], 1
    %12 = vsyncpa %s11, 0
    %13 = vsyncpa [#allocation6], 0
    %s14 = scalar_lea.sflag [#allocation6], 1
    %15 = vsyncpa %s14, 0
    loop: start=0, step=1, limit=4
    $region2: #{tpu_custom_call.1} parent=1 // loop_pre_header
      _
    $region3: #{tpu_custom_call.1} parent=1 // loop_header
      %s17 = sphi 0, %s21
      %p18 = scmp.ge.s32.totalorder %s17, 4
      %s24 = sphi 0, %s36
      %s25 = sphi 0, %s32
      %s26 = sphi 0, %s24
      %s27 = sphi 0, %s25
      %s28 = sphi 0, %s26
      %s29 = sphi 0, %s27
      %s41 = sphi 0, %s43
      %s44 = sphi 0, %s41
      %s45 = sphi 0, %s44
      %s61 = sphi 0, %s45
      %s69 = sphi 0, %s71
      %s72 = sphi 0, %s69
      %s73 = sphi 0, %s72
      %s89 = sphi 0, %s73
      %s95 = sphi 0, %s97
      %s98 = sphi 0, %s95
      %s99 = sphi 0, %s98
      %s115 = sphi 0, %s99
    $region4: #{tpu_custom_call.1} parent=1 // loop_header_branch
      %20 = sbr.rel (%p18) target = $region8
    $region5: #{tpu_custom_call.1} parent=1 // loop_body
      %s22 = ssub.s32 %s17, 1
      %s23 = ssub.s32 %s17, 2
      %s30 = sadd.s32 1, %s25
      %p31 = scmp.ge.s32.totalorder %s30, 1
      %s32 = scalar_select %p31, 0, %s30
      %s33 = sadd.s32 1, %s24
      %s34 = scalar_select %p31, %s33, %s24
      %p35 = scmp.ge.s32.totalorder %s34, 2
      %s36 = scalar_select %p35, 0, %s34
      %s37 = ssub.s32 %s24, %s36
      %s38 = ssub.s32 %s25, %s32
      %s39 = sor.u32 %s37, %s38
      %p40 = scmp.eq.s32.totalorder %s39, 0
      %s42 = sadd.s32 %s41, 1
      %s43 = scalar_select %p40, %s41, %s42
      %p46 = pneg %p40
      %p47 = scmp.eq.s32.totalorder %s17, 1
      %p48 = por %p46, %p47
      %p49 = scmp.ne.s32.totalorder %s41, %s44
      %p50 = scmp.eq.s32.totalorder %s17, 0
      %p51 = por %p49, %p50
      %p52 = scmp.ne.s32.totalorder %s41, %s44
      %p53 = scmp.eq.s32.totalorder %s22, 1
      %p54 = por %p52, %p53
      %p55 = scmp.ne.s32.totalorder %s44, %s45
      %p56 = scmp.eq.s32.totalorder %s22, 0
      %p57 = por %p55, %p56
      %p58 = scmp.ne.s32.totalorder %s44, %s45
      %p59 = scmp.eq.s32.totalorder %s23, 1
      %p60 = por %p58, %p59
      %p62 = scmp.ne.s32.totalorder %s45, %s61
      %p63 = scmp.eq.s32.totalorder %s23, 0
      %p64 = por %p62, %p63
      %s65 = ssub.s32 %s24, %s36
      %s66 = ssub.s32 %s25, %s32
      %s67 = sor.u32 %s65, %s66
      %p68 = scmp.eq.s32.totalorder %s67, 0
      %s70 = sadd.s32 %s69, 1
      %s71 = scalar_select %p68, %s69, %s70
      %p74 = pneg %p68
      %p75 = scmp.eq.s32.totalorder %s17, 1
      %p76 = por %p74, %p75
      %p77 = scmp.ne.s32.totalorder %s69, %s72
      %p78 = scmp.eq.s32.totalorder %s17, 0
      %p79 = por %p77, %p78
      %p80 = scmp.ne.s32.totalorder %s69, %s72
      %p81 = scmp.eq.s32.totalorder %s22, 1
      %p82 = por %p80, %p81
      %p83 = scmp.ne.s32.totalorder %s72, %s73
      %p84 = scmp.eq.s32.totalorder %s22, 0
      %p85 = por %p83, %p84
      %p86 = scmp.ne.s32.totalorder %s72, %s73
      %p87 = scmp.eq.s32.totalorder %s23, 1
      %p88 = por %p86, %p87
      %p90 = scmp.ne.s32.totalorder %s73, %s89
      %p91 = scmp.eq.s32.totalorder %s23, 0
      %p92 = por %p90, %p91
      %s93 = ssub.s32 %s24, %s36
      %p94 = scmp.eq.s32.totalorder %s93, 0
      %s96 = sadd.s32 %s95, 1
      %s97 = scalar_select %p94, %s95, %s96
      %p100 = pneg %p94
      %p101 = scmp.eq.s32.totalorder %s17, 1
      %p102 = por %p100, %p101
      %p103 = scmp.ne.s32.totalorder %s95, %s98
      %p104 = scmp.eq.s32.totalorder %s17, 0
      %p105 = por %p103, %p104
      %p106 = scmp.ne.s32.totalorder %s95, %s98
      %p107 = scmp.eq.s32.totalorder %s22, 1
      %p108 = por %p106, %p107
      %p109 = scmp.ne.s32.totalorder %s98, %s99
      %p110 = scmp.eq.s32.totalorder %s22, 0
      %p111 = por %p109, %p110
      %p112 = scmp.ne.s32.totalorder %s98, %s99
      %p113 = scmp.eq.s32.totalorder %s23, 1
      %p114 = por %p112, %p113
      %p116 = scmp.ne.s32.totalorder %s99, %s115
      %p117 = scmp.eq.s32.totalorder %s23, 0
      %p118 = por %p116, %p117
      %p119 = scmp.le.s32.totalorder 1, %s17
      %p120 = scmp.lt.s32.totalorder %s17, 3
      %p121 = pnand %p119, %p120
      %p122 = pneg %p121
      // Predicated region
      $region9: #{tpu_custom_call.1} parent=5 // pred_check
        _
      $region10: #{tpu_custom_call.1} parent=5 // pred_check_branch
        %124 = sbr.rel (%p121) target = $region12
      $region11: #{tpu_custom_call.1} parent=5 // pred_region
        %s125 = ssub.s32 %s17, 1
      $region12: #{tpu_custom_call.1} parent=5 // pred_fallthru
        _
      %p126 = scmp.lt.s32.totalorder %s17, 2
      // Predicated region
      $region13: #{tpu_custom_call.1} parent=5 // pred_check
        %p127 = pneg %p126
      $region14: #{tpu_custom_call.1} parent=5 // pred_check_branch
        %129 = sbr.rel (%p127) target = $region16
      $region15: #{tpu_custom_call.1} parent=5 // pred_region
        // Predicated region
        $region17: #{tpu_custom_call.1} parent=15 // pred_check
          %p130 = pneg %p51
        $region18: #{tpu_custom_call.1} parent=15 // pred_check_branch
          %132 = sbr.rel (%p130) target = $region20
        $region19: #{tpu_custom_call.1} parent=15 // pred_region
          %s133 = sand.u32 %s41, 1
          %s134 = scalar_lea.sflag [#allocation5], %s133
          %s135 = sand.u32 %s41, 1
          %s136 = smul.addr %s135, 8
          %s137 = scalar_lea.vmem [#allocation4], %s136
          %139 = vsyncadd %s134, 0
          %s140 = sadd.s32 %s25, %s24
          %s141 = smul.addr %s140, 8
          %s142 = scalar_lea.hbm %s0, %s141
          %s144 = sshll.u32 %s142, 4
          %s145 = int_to_ptr.hbm [resolvable:$true] %s144
          %s146 = sshll.u32 %s137, 4
          %s147 = int_to_ptr.vmem [resolvable:$true] %s146
          %149 = dma.hbm_to_vmem [thread:$0]  %s145, 128, %s147, %s134
        $region20: #{tpu_custom_call.1} parent=15 // pred_fallthru
          _
        // Predicated region
        $region21: #{tpu_custom_call.1} parent=15 // pred_check
          %p150 = pneg %p79
        $region22: #{tpu_custom_call.1} parent=15 // pred_check_branch
          %152 = sbr.rel (%p150) target = $region24
        $region23: #{tpu_custom_call.1} parent=15 // pred_region
          %s153 = sand.u32 %s69, 1
          %s154 = scalar_lea.sflag [#allocation8], %s153
          %s155 = sand.u32 %s69, 1
          %s156 = smul.addr %s155, 8
          %s157 = scalar_lea.vmem [#allocation7], %s156
          %159 = vsyncadd %s154, 0
          %s160 = sadd.s32 %s25, %s24
          %s161 = smul.addr %s160, 8
          %s162 = scalar_lea.hbm %s1, %s161
          %s164 = sshll.u32 %s162, 4
          %s165 = int_to_ptr.hbm [resolvable:$true] %s164
          %s166 = sshll.u32 %s157, 4
          %s167 = int_to_ptr.vmem [resolvable:$true] %s166
          %169 = dma.hbm_to_vmem [thread:$0]  %s165, 128, %s167, %s154
        $region24: #{tpu_custom_call.1} parent=15 // pred_fallthru
          _
      $region16: #{tpu_custom_call.1} parent=5 // pred_fallthru
        _
      %p170 = scmp.le.s32.totalorder 1, %s17
      %p171 = scmp.lt.s32.totalorder %s17, 3
      %p172 = pnand %p170, %p171
      %p173 = pneg %p172
      // Predicated region
      $region25: #{tpu_custom_call.1} parent=5 // pred_check
        _
      $region26: #{tpu_custom_call.1} parent=5 // pred_check_branch
        %175 = sbr.rel (%p172) target = $region28
      $region27: #{tpu_custom_call.1} parent=5 // pred_region
        %s176 = ssub.s32 %s17, 1
        %s177 = sand.u32 %s44, 1
        %s178 = scalar_lea.sflag [#allocation5], %s177
        %s179 = sand.u32 %s44, 1
        %s180 = smul.addr %s179, 8
        %s181 = scalar_lea.vmem [#allocation4], %s180
        // Predicated region
        $region29: #{tpu_custom_call.1} parent=27 // pred_check
          %p182 = pneg %p57
        $region30: #{tpu_custom_call.1} parent=27 // pred_check_branch
          %184 = sbr.rel (%p182) target = $region32
        $region31: #{tpu_custom_call.1} parent=27 // pred_region
          %186 = dma.done %s178, 128
        $region32: #{tpu_custom_call.1} parent=27 // pred_fallthru
          _
        %s187 = sand.u32 %s72, 1
        %s188 = scalar_lea.sflag [#allocation8], %s187
        %s189 = sand.u32 %s72, 1
        %s190 = smul.addr %s189, 8
        %s191 = scalar_lea.vmem [#allocation7], %s190
        // Predicated region
        $region33: #{tpu_custom_call.1} parent=27 // pred_check
          %p192 = pneg %p85
        $region34: #{tpu_custom_call.1} parent=27 // pred_check_branch
          %194 = sbr.rel (%p192) target = $region36
        $region35: #{tpu_custom_call.1} parent=27 // pred_region
          %196 = dma.done %s188, 128
        $region36: #{tpu_custom_call.1} parent=27 // pred_fallthru
          _
        %s197 = sand.u32 %s44, 1
        %s198 = scalar_lea.sflag [#allocation5], %s197
        %s199 = sand.u32 %s44, 1
        %s200 = smul.addr %s199, 8
        %s201 = scalar_lea.vmem [#allocation4], %s200
        %p202 = pneg %p57
        %p203 = pneg %p54
        %s204 = sand.u32 %s72, 1
        %s205 = scalar_lea.sflag [#allocation8], %s204
        %s206 = sand.u32 %s72, 1
        %s207 = smul.addr %s206, 8
        %s208 = scalar_lea.vmem [#allocation7], %s207
        %p209 = pneg %p85
        %p210 = pneg %p82
        %p211 = pneg %p111
        %p212 = pneg %p108
        %s213 = sand.u32 %s98, 1
        %s214 = scalar_lea.sflag [#allocation6], %s213
        %s215 = sand.u32 %s98, 1
        %s216 = smul.addr %s215, 8
        %s217 = scalar_lea.vmem [#allocation9], %s216
        %p218 = scmp.eq.s32.totalorder %s27, 0
        // Predicated region
        $region37: #{tpu_custom_call.1} parent=27 // pred_check
          %p219 = pneg %p218
        $region38: #{tpu_custom_call.1} parent=27 // pred_check_branch
          %221 = sbr.rel (%p219) target = $region40
        $region39: #{tpu_custom_call.1} parent=27 // pred_region
          %222 = vst [vmem:[#allocation2] sm:$0x1] 0.0
          %223 = vst [vmem:[#allocation3] sm:$0x1] 0.0
        $region40: #{tpu_custom_call.1} parent=27 // pred_fallthru
          _
        %v224 = vld [vmem:[%s181] sm:$0xff]
        %v225 = vld [vmem:[%s191] sm:$0xff]
        %v226 = vld [vmem:[#allocation2] sm:$0x1]
        %v227 = vmul.f32 %v224, %v225
        %v228 = vrot.slane %v227, 4
        %v229 = vadd.f32 %v227, %v228
        %v230 = vrot.slane %v229, 2
        %v231 = vadd.f32 %v229, %v230
        %v232 = vrot.slane %v231, 1
        %v233 = vadd.f32 %v231, %v232
        %v234 = vadd.f32 %v226, %v233
        %235 = vst [vmem:[#allocation2] sm:$0x1] %v234
        %v236 = vld [vmem:[#allocation3] sm:$0x1]
        %v237 = vadd.f32 %v224, %v225
        %v238 = vrot.slane %v237, 4
        %v239 = vadd.f32 %v237, %v238
        %v240 = vrot.slane %v239, 2
        %v241 = vadd.f32 %v239, %v240
        %v242 = vrot.slane %v241, 1
        %v243 = vadd.f32 %v241, %v242
        %v244 = vadd.f32 %v236, %v243
        %245 = vst [vmem:[#allocation3] sm:$0x1] %v244
        // Predicated region
        $region41: #{tpu_custom_call.1} parent=27 // pred_check
          %p246 = pneg %p218
        $region42: #{tpu_custom_call.1} parent=27 // pred_check_branch
          %248 = sbr.rel (%p246) target = $region44
        $region43: #{tpu_custom_call.1} parent=27 // pred_region
          %v249 = vld [vmem:[#allocation2] sm:$0x1]
          %vm250 = vcmask 1040384
          %v251 = vsel %vm250, %v249, 0.0
          %252 = vadd.xlane.f32.xlu0 %v251
          %v253 = vpop.xlane.xlu0 %252
          %v254 = vld [vmem:[#allocation3] sm:$0x1]
          %v255 = vsel %vm250, %v254, 0.0
          %256 = vadd.xlane.f32.xlu0 %v255
          %v257 = vpop.xlane.xlu0 %256
          %v258 = vmul.f32 %v253, 2.0
          %v259 = vadd.f32 %v258, 1.0
          %v260 = vadd.f32 %v257, 1.0
          %v261 = vrcp.pop %v260
          %v262 = vmul.f32 %v260, %v261
          %v263 = vsub.f32 1.0, %v262
          %v264 = vmul.f32 %v261, %v263
          %v265 = vadd.f32 %v261, %v264
          %vm266 = vweird.f32 %v260
          %vm267 = vweird.f32 %v261
          %vm268 = vmor %vm266, %vm267
          %v269 = vsel %vm268, %v261, %v265
          %v270 = vand.u32 2147483647, %v260
          %vm271 = vcmp.eq.f32.partialorder %v270, 8.507059e+37
          %v272 = vand.u32 %v260, 2147483648
          %v273 = vor.u32 1.1754944e-38, %v272
          %v274 = vsel %vm271, %v273, %v269
          %v275 = vmul.f32 %v259, %v274
          %v276 = vperm.slane %v275, 0
          %277 = vst [vmem:[%s217] sm:$0xff] %v276
        $region44: #{tpu_custom_call.1} parent=27 // pred_fallthru
          _
        %s278 = sand.u32 %s98, 1
        %s279 = scalar_lea.sflag [#allocation6], %s278
        %s280 = sand.u32 %s98, 1
        %s281 = smul.addr %s280, 8
        %s282 = scalar_lea.vmem [#allocation9], %s281
        // Predicated region
        $region45: #{tpu_custom_call.1} parent=27 // pred_check
          %p283 = pneg %p108
        $region46: #{tpu_custom_call.1} parent=27 // pred_check_branch
          %285 = sbr.rel (%p283) target = $region48
        $region47: #{tpu_custom_call.1} parent=27 // pred_region
          %287 = vsyncadd %s279, 0
          %s288 = smul.addr %s26, 8
          %s289 = scalar_lea.hbm %s2, %s288
          %s291 = sshll.u32 %s282, 4
          %s292 = int_to_ptr.vmem [resolvable:$true] %s291
          %s293 = sshll.u32 %s289, 4
          %s294 = int_to_ptr.hbm [resolvable:$true] %s293
          %296 = dma.vmem_to_hbm [thread:$0]  %s292, 128, %s294, %s279
        $region48: #{tpu_custom_call.1} parent=27 // pred_fallthru
          _
      $region28: #{tpu_custom_call.1} parent=5 // pred_fallthru
        _
      %p297 = scmp.le.s32.totalorder 2, %s17
      // Predicated region
      $region49: #{tpu_custom_call.1} parent=5 // pred_check
        %p298 = pneg %p297
      $region50: #{tpu_custom_call.1} parent=5 // pred_check_branch
        %300 = sbr.rel (%p298) target = $region52
      $region51: #{tpu_custom_call.1} parent=5 // pred_region
        %s301 = ssub.s32 %s17, 2
        // Predicated region
        $region53: #{tpu_custom_call.1} parent=51 // pred_check
          %p302 = pneg %p114
        $region54: #{tpu_custom_call.1} parent=51 // pred_check_branch
          %304 = sbr.rel (%p302) target = $region56
        $region55: #{tpu_custom_call.1} parent=51 // pred_region
          %s305 = sand.u32 %s99, 1
          %s306 = scalar_lea.sflag [#allocation6], %s305
          %s307 = sand.u32 %s99, 1
          %s308 = smul.addr %s307, 8
          %s309 = scalar_lea.vmem [#allocation9], %s308
          %311 = dma.done %s306, 128
        $region56: #{tpu_custom_call.1} parent=51 // pred_fallthru
          _
      $region52: #{tpu_custom_call.1} parent=5 // pred_fallthru
        _
    $region6: #{tpu_custom_call.1} parent=1 // loop_footer
      %s21 = sadd.s32 1, %s17
    $region7: #{tpu_custom_call.1} parent=1 // loop_footer_branch
      %16 = sbr.rel target = $region3
    $region8: #{tpu_custom_call.1} parent=1 // loop_exit
      _
    %312 = vsyncpa [#allocation5], 1
    %s313 = scalar_lea.sflag [#allocation5], 1
    %314 = vsyncpa %s313, 1
    %315 = vsyncpa [#allocation8], 1
    %s316 = scalar_lea.sflag [#allocation8], 1
    %317 = vsyncpa %s316, 1
    %318 = vsyncpa [#allocation6], 1
    %s319 = scalar_lea.sflag [#allocation6], 1
    %320 = vsyncpa %s319, 1

</llo_original>
